<compile_context>
chip_gen: v7x
topology: tpu7x:2x2x1
jax: 0.10.0
libtpu: 0.0.40
codegen_flags: <defaults>
</compile_context>

<pallas_src>
import functools

import jax
import jax.numpy as jnp
from jax.experimental import pallas as pl
from jax.experimental.pallas import tpu as pltpu


def _gelu_tanh(v):
    # gelu_pytorch_tanh (tanh approximation of GELU), computed in f32.
    c = jnp.float32(0.7978845608028654)  # sqrt(2/pi)
    return 0.5 * v * (1.0 + jnp.tanh(c * (v + 0.044715 * v * v * v)))


def _cdiv(a, b):
    return (a + b - 1) // b


def _round_up(x, m):
    return _cdiv(x, m) * m


def _vmem_capacity_bytes():
    try:
        return int(pltpu.get_tpu_info().vmem_capacity_bytes)
    except Exception:
        return 64 * 1024 * 1024  # conservative fallback (v7x per-core VMEM)


def _plan_bytes(tm, ti, H, x_bytes, w_bytes):
    """VMEM bytes for one grid step: double-buffered tiles + scratch + temps."""
    return (2 * tm * H * x_bytes            # x tile (double-buffered)
            + 2 * tm * H * x_bytes          # out tile (double-buffered)
            + 2 * H * (2 * ti) * w_bytes    # fused [gate|up] tile (double-buffered)
            + 2 * ti * H * w_bytes          # down tile (double-buffered)
            + tm * H * 4                    # f32 accumulator scratch
            + 6 * tm * ti * 4)              # compiler-internal f32 temps (g, u, h, gelu)


def pick_plan(M, H, I, x_dtype, w_dtype):
    """Choose (tm, ti, vmem_limit_bytes) for this device generation."""
    x_bytes = jnp.dtype(x_dtype).itemsize
    w_bytes = jnp.dtype(w_dtype).itemsize
    vmem_cap = _vmem_capacity_bytes()
    budget = int(vmem_cap * 0.8)
    sub = 16 if x_bytes <= 2 else 8

    # Weights are re-streamed once per token tile, so arithmetic intensity ~ tm.
    # Prefer tm=512 for large M on 96+ MiB VMEM parts (v5e/v6e); 256 otherwise.
    tm_pref = 512 if (M >= 512 and vmem_cap >= 96 * 1024 * 1024) else 256
    tm_cands = [t for t in (512, 256, 128, 64, 32, 16, 8) if t <= tm_pref]

    ip128 = _round_up(I, 128)
    ti_cands = sorted({min(t, ip128) for t in (2048, 1024, 512, 256, 128)},
                      reverse=True)

    for tm in tm_cands:            # prefer the largest token tile that fits,
        for ti in ti_cands:        # then the largest reduction tile within it.
            est = _plan_bytes(tm, ti, H, x_bytes, w_bytes)
            if est <= budget:
                limit = min(vmem_cap,
                            max(16 * 1024 * 1024, est + 8 * 1024 * 1024))
                return tm, ti, limit
    # Fallback: smallest plan, let the compiler try anyway.
    return tm_cands[-1], ti_cands[-1], vmem_cap


def prepare_gemma2_mlp_weights(gate_w, up_w, down_w, ti):
    """One-time weight preparation (run OUTSIDE jit, at weight-load time).

    gate_w, up_w: [H, I]  (PyTorch W.T, i.e. stored in x out order)
    down_w:       [I, H]
    Returns (gu_w [H, 2*Ip], down_w [Ip, H]) where Ip = round_up(I, ti) and
    the columns of I-tile j of gu_w are [gate_j | up_j].  Padded columns/rows
    are zero, so gelu(0)*0 @ 0 contributes nothing to the output.
    """
    H, I = gate_w.shape
    Ip = _round_up(I, ti)
    if Ip != I:
        gate_w = jnp.pad(gate_w, ((0, 0), (0, Ip - I)))
        up_w = jnp.pad(up_w, ((0, 0), (0, Ip - I)))
        down_w = jnp.pad(down_w, ((0, Ip - I), (0, 0)))
    g = gate_w.reshape(H, Ip // ti, ti)
    u = up_w.reshape(H, Ip // ti, ti)
    gu_w = jnp.concatenate([g, u], axis=-1).reshape(H, 2 * Ip)
    return gu_w, down_w


def _gemma2_mlp_kernel(x_ref, gu_ref, down_ref, o_ref, acc_ref):
    # x_ref:    (tm, H)      token tile, resident across the I axis
    # gu_ref:   (H, 2*ti)    fused [gate_j | up_j] weight tile for I-slice j
    # down_ref: (ti, H)      down-projection weight tile for I-slice j
    # o_ref:    (tm, H)      output tile (written once, at the last I-step)
    # acc_ref:  (tm, H) f32  VMEM accumulator scratch
    j = pl.program_id(1)

    @pl.when(j == 0)
    def _init():
        acc_ref[...] = jnp.zeros_like(acc_ref)

    ti = down_ref.shape[0]
    # One MXU call produces both gate and up activations; the split at ti
    # (a multiple of 128 at real sizes) is a lane-aligned view.
    gu = jnp.dot(x_ref[...], gu_ref[...], preferred_element_type=jnp.float32)
    g = gu[:, :ti]
    u = gu[:, ti:]
    h = _gelu_tanh(g) * u
    acc_ref[...] += jnp.dot(h.astype(down_ref.dtype), down_ref[...],
                            preferred_element_type=jnp.float32)

    @pl.when(j == pl.num_programs(1) - 1)
    def _finalize():
        o_ref[...] = acc_ref[...].astype(o_ref.dtype)


@functools.partial(jax.jit, static_argnames=("tm", "ti", "vmem_limit_bytes"))
def gemma2_mlp(x, gu_w, down_w, *, tm, ti, vmem_limit_bytes):
    """Fused Gemma2 MLP.

    x:      [M, H]      tokens (batch*seq flattened)
    gu_w:   [H, 2*Ip]   fused gate/up weight from prepare_gemma2_mlp_weights
    down_w: [Ip, H]     down_proj weight (rows padded to Ip)
    returns [M, H]
    """
    M, H = x.shape
    Ip = down_w.shape[0]
    assert gu_w.shape == (H, 2 * Ip), "weights were prepared with a different ti"
    assert Ip % ti == 0

    # Balanced token tiling: minimize padded rows while keeping sublane alignment.
    sub = 16 if x.dtype.itemsize <= 2 else 8
    n_tok = _cdiv(M, tm)
    tm = min(tm, _round_up(_cdiv(M, n_tok), sub))
    Mp = n_tok * tm
    if Mp != M:
        x = jnp.pad(x, ((0, Mp - M), (0, 0)))

    grid = (n_tok, Ip // ti)

    out = pl.pallas_call(
        _gemma2_mlp_kernel,
        out_shape=jax.ShapeDtypeStruct((Mp, H), x.dtype),
        grid_spec=pltpu.PrefetchScalarGridSpec(
            num_scalar_prefetch=0,
            grid=grid,
            in_specs=[
                # x tile: constant across the I axis -> stays resident.
                pl.BlockSpec((tm, H), lambda i, j: (i, 0)),
                # fused [gate|up] weight tile for I-slice j.
                pl.BlockSpec((H, 2 * ti), lambda i, j: (0, j)),
                # down weight tile for I-slice j.
                pl.BlockSpec((ti, H), lambda i, j: (j, 0)),
            ],
            # Same output block across the I axis => accumulator-style output,
            # written once (lane-dense) at the last I-step.
            out_specs=pl.BlockSpec((tm, H), lambda i, j: (i, 0)),
            scratch_shapes=[pltpu.VMEM((tm, H), jnp.float32)],
        ),
        compiler_params=pltpu.CompilerParams(
            # TODO(synk): for decode-sized M on v7x (single token tile), split the
            # I reduction across the two TensorCores (core_map + per-core partial
            # accumulators + one cross-core add) so the second core isn't idle.
            dimension_semantics=("parallel", "arbitrary"),
            # Sized from the actual tile plan (incl. double-buffering + internal
            # f32 temporaries), capped at the device's physical VMEM.
            vmem_limit_bytes=vmem_limit_bytes,
        ),
    )(x, gu_w, down_w)

    return out[:M]


def gemma2_mlp_ref(x, gate_w, up_w, down_w):
    xf = x.astype(jnp.float32)
    g = xf @ gate_w.astype(jnp.float32)
    u = xf @ up_w.astype(jnp.float32)
    h = _gelu_tanh(g) * u
    return (h @ down_w.astype(jnp.float32)).astype(x.dtype)


if __name__ == "__main__":
    # Small config consistent with the module: hidden_size=32,
    # intermediate_size=64, batch=2, seq=8.
    batch, seq, hidden, inter = 2, 8, 32, 64

    key = jax.random.PRNGKey(0)
    kx, kg, ku, kd = jax.random.split(key, 4)

    x = jax.random.normal(kx, (batch, seq, hidden), dtype=jnp.float32)
    # Weights stored as [in, out] (PyTorch W.T).
    gate_w = jax.random.normal(kg, (hidden, inter), dtype=jnp.float32) * 0.02
    up_w = jax.random.normal(ku, (hidden, inter), dtype=jnp.float32) * 0.02
    down_w = jax.random.normal(kd, (inter, hidden), dtype=jnp.float32) * 0.02

    x2d = x.reshape(batch * seq, hidden)
    M, H = x2d.shape
    I = gate_w.shape[1]

    # --- f32 check --------------------------------------------------------
    tm, ti, vmem_limit = pick_plan(M, H, I, x2d.dtype, gate_w.dtype)
    # One-time weight prep (would happen at model-load time in a real model).
    gu_w, down_wp = prepare_gemma2_mlp_weights(gate_w, up_w, down_w, ti)
    out = gemma2_mlp(x2d, gu_w, down_wp, tm=tm, ti=ti,
                     vmem_limit_bytes=vmem_limit)
    out = jax.block_until_ready(out).reshape(batch, seq, hidden)

    ref = gemma2_mlp_ref(x2d, gate_w, up_w, down_w).reshape(batch, seq, hidden)
    assert out.shape == (batch, seq, hidden)
    assert jnp.allclose(out, ref, atol=1e-5, rtol=1e-5), "f32 mismatch vs JAX reference"

    # --- bf16 check (real-model weight dtype; looser tolerance) ------------
    xb = x2d.astype(jnp.bfloat16)
    gb, ub, db = (w.astype(jnp.bfloat16) for w in (gate_w, up_w, down_w))
    tm_b, ti_b, vmem_b = pick_plan(M, H, I, xb.dtype, gb.dtype)
    gu_b, db_p = prepare_gemma2_mlp_weights(gb, ub, db, ti_b)
    out_b = gemma2_mlp(xb, gu_b, db_p, tm=tm_b, ti=ti_b,
                       vmem_limit_bytes=vmem_b)
    out_b = jax.block_until_ready(out_b)
    ref_b = gemma2_mlp_ref(xb, gb, ub, db)
    assert jnp.allclose(out_b.astype(jnp.float32), ref_b.astype(jnp.float32),
                        atol=5e-2, rtol=5e-2), "bf16 mismatch vs JAX reference"

    print("KERNEL_OK")
</pallas_src>

<mosaic_0001>
module attributes {stable_mosaic.version = 11 : i64} {
  func.func @_gemma2_mlp_kernel(%arg0: i32, %arg1: i32, %arg2: memref<16x32xf32, #tpu.memory_space<vmem>>, %arg3: memref<32x256xf32, #tpu.memory_space<vmem>>, %arg4: memref<128x32xf32, #tpu.memory_space<vmem>>, %arg5: memref<16x32xf32, #tpu.memory_space<vmem>>, %arg6: memref<16x32xf32, #tpu.memory_space<vmem>>) attributes {dimension_semantics = [#tpu.dimension_semantics<parallel>, #tpu.dimension_semantics<arbitrary>], iteration_bounds = array<i64: 1, 1>, scalar_prefetch = 0 : i64, scratch_operands = 1 : i64, tpu.core_type = #tpu.core_type<tc>, window_params = [{transform_indices = @transform_0, window_bounds = array<i64: 16, 32>}, {transform_indices = @transform_1, window_bounds = array<i64: 32, 256>}, {transform_indices = @transform_2, window_bounds = array<i64: 128, 32>}, {transform_indices = @transform_3, window_bounds = array<i64: 16, 32>}]} {
    %c0_i32 = arith.constant 0 : i32
    %0 = arith.cmpi eq, %arg1, %c0_i32 : i32
    %1 = arith.extui %0 : i1 to i32
    %c0_i32_0 = arith.constant 0 : i32
    %2 = arith.cmpi ne, %1, %c0_i32_0 : i32
    scf.if %2 {
      %cst_17 = arith.constant 0.000000e+00 : f32
      %30 = vector.broadcast %cst_17 : f32 to vector<16x32xf32>
      %c0_18 = arith.constant 0 : index
      %c0_19 = arith.constant 0 : index
      %31 = vector.load %arg6[%c0_18, %c0_19] : memref<16x32xf32, #tpu.memory_space<vmem>>, vector<16x32xf32>
      tpu.vector_store %arg6[%c0_18, %c0_19], %30 {strides = array<i32>} : memref<16x32xf32, #tpu.memory_space<vmem>>, vector<16x32xf32>,
    } else {
    }
    %c0 = arith.constant 0 : index
    %c0_1 = arith.constant 0 : index
    %3 = vector.load %arg2[%c0, %c0_1] : memref<16x32xf32, #tpu.memory_space<vmem>>, vector<16x32xf32>
    %c0_2 = arith.constant 0 : index
    %c0_3 = arith.constant 0 : index
    %4 = vector.load %arg3[%c0_2, %c0_3] : memref<32x256xf32, #tpu.memory_space<vmem>>, vector<32x256xf32>
    %cst = arith.constant dense<0.000000e+00> : vector<16x256xf32>
    %5 = tpu.matmul %3, %4, %cst {dimension_numbers = #tpu.dot_dimension_numbers<[1], [0], [0], [1], [0, 0, 1, 1], [], []>} : vector<16x32xf32>, vector<32x256xf32>, vector<16x256xf32> -> vector<16x256xf32>
    %6 = vector.extract_strided_slice %5 {offsets = [0, 0], sizes = [16, 128], strides = [1, 1]} : vector<16x256xf32> to vector<16x128xf32>
    %7 = vector.extract_strided_slice %5 {offsets = [0, 128], sizes = [16, 128], strides = [1, 1]} : vector<16x256xf32> to vector<16x128xf32>
    %cst_4 = arith.constant 5.000000e-01 : f32
    %8 = vector.broadcast %cst_4 : f32 to vector<16x128xf32>
    %9 = arith.mulf %8, %6 : vector<16x128xf32>
    %cst_5 = arith.constant 4.471500e-02 : f32
    %10 = vector.broadcast %cst_5 : f32 to vector<16x128xf32>
    %11 = arith.mulf %10, %6 : vector<16x128xf32>
    %12 = arith.mulf %11, %6 : vector<16x128xf32>
    %13 = arith.mulf %12, %6 : vector<16x128xf32>
    %14 = arith.addf %6, %13 : vector<16x128xf32>
    %cst_6 = arith.constant 0.797884583 : f32
    %15 = vector.broadcast %cst_6 : f32 to vector<16x128xf32>
    %16 = arith.mulf %15, %14 : vector<16x128xf32>
    %17 = math.tanh %16 : vector<16x128xf32>
    %cst_7 = arith.constant 1.000000e+00 : f32
    %18 = vector.broadcast %cst_7 : f32 to vector<16x128xf32>
    %19 = arith.addf %18, %17 : vector<16x128xf32>
    %20 = arith.mulf %9, %19 : vector<16x128xf32>
    %21 = arith.mulf %20, %7 : vector<16x128xf32>
    %c0_8 = arith.constant 0 : index
    %c0_9 = arith.constant 0 : index
    %22 = vector.load %arg6[%c0_8, %c0_9] : memref<16x32xf32, #tpu.memory_space<vmem>>, vector<16x32xf32>
    %c0_10 = arith.constant 0 : index
    %c0_11 = arith.constant 0 : index
    %23 = vector.load %arg4[%c0_10, %c0_11] : memref<128x32xf32, #tpu.memory_space<vmem>>, vector<128x32xf32>
    %cst_12 = arith.constant dense<0.000000e+00> : vector<16x32xf32>
    %24 = tpu.matmul %21, %23, %cst_12 {dimension_numbers = #tpu.dot_dimension_numbers<[1], [0], [0], [1], [0, 0, 1, 1], [], []>} : vector<16x128xf32>, vector<128x32xf32>, vector<16x32xf32> -> vector<16x32xf32>
    %25 = arith.addf %22, %24 : vector<16x32xf32>
    %c0_13 = arith.constant 0 : index
    %c0_14 = arith.constant 0 : index
    %26 = vector.load %arg6[%c0_13, %c0_14] : memref<16x32xf32, #tpu.memory_space<vmem>>, vector<16x32xf32>
    tpu.vector_store %arg6[%c0_13, %c0_14], %25 {strides = array<i32>} : memref<16x32xf32, #tpu.memory_space<vmem>>, vector<16x32xf32>,
    %c0_i32_15 = arith.constant 0 : i32
    %27 = arith.cmpi eq, %arg1, %c0_i32_15 : i32
    %28 = arith.extui %27 : i1 to i32
    %c0_i32_16 = arith.constant 0 : i32
    %29 = arith.cmpi ne, %28, %c0_i32_16 : i32
    scf.if %29 {
      %c0_17 = arith.constant 0 : index
      %c0_18 = arith.constant 0 : index
      %30 = vector.load %arg6[%c0_17, %c0_18] : memref<16x32xf32, #tpu.memory_space<vmem>>, vector<16x32xf32>
      %c0_19 = arith.constant 0 : index
      %c0_20 = arith.constant 0 : index
      %31 = vector.load %arg5[%c0_19, %c0_20] : memref<16x32xf32, #tpu.memory_space<vmem>>, vector<16x32xf32>
      tpu.vector_store %arg5[%c0_19, %c0_20], %30 {strides = array<i32>} : memref<16x32xf32, #tpu.memory_space<vmem>>, vector<16x32xf32>,
    } else {
    }
    return
  }
  func.func @transform_0(%arg0: i32, %arg1: i32) -> (i32, i32) {
    %c0_i32 = arith.constant 0 : i32
    %c0_i32_0 = arith.constant 0 : i32
    return %arg0, %c0_i32 : i32, i32
  }
  func.func @transform_1(%arg0: i32, %arg1: i32) -> (i32, i32) {
    %c0_i32 = arith.constant 0 : i32
    %c0_i32_0 = arith.constant 0 : i32
    return %c0_i32, %arg1 : i32, i32
  }
  func.func @transform_2(%arg0: i32, %arg1: i32) -> (i32, i32) {
    %c0_i32 = arith.constant 0 : i32
    %c0_i32_0 = arith.constant 0 : i32
    return %arg1, %c0_i32 : i32, i32
  }
  func.func @transform_3(%arg0: i32, %arg1: i32) -> (i32, i32) {
    %c0_i32 = arith.constant 0 : i32
    %c0_i32_0 = arith.constant 0 : i32
    return %arg0, %c0_i32 : i32, i32
  }
}

</mosaic_0001>

<llo_original>
// kernel: gemma2_mlp.1
$region0: #{gemma2_mlp.1}
  #allocation0 [shape = 'u32[]', space=smem, size = 0x4, offset = 0x4, fixed_abs, tag = 'smem constant byte address 0x4 - core index']
  #allocation1 [shape = 'u32[144,128]{1,0:T(1,128)}', space=vmem, size = 0x12000, scoped, tag = 'internal scratch']
  #allocation2 [shape = 'f32[16,32]{1,0:T(8,128)}', space=vmem, size = 0x2000, scoped, tag = 'scratch operand']
  %s0 = inlined_call_operand.vmem [shape: f32[16,32], index: 0, kind: input, shape index: {}]
  %s1 = inlined_call_operand.vmem [shape: f32[32,256], index: 1, kind: input, shape index: {}]
  %s2 = inlined_call_operand.vmem [shape: f32[128,32], index: 2, kind: input, shape index: {}]
  %s3 = inlined_call_operand.hbm [shape: f32[16,32], index: 3, kind: output, shape index: {}]
  %s4 = sld [smem:[#allocation0]]
  $region30: #{gemma2_mlp.1} parent=0
    _
  %s6 = ssub.s32 1, %s4
  %s7 = scalar_select 0, %s6, %s4
  $region1: #{gemma2_mlp.1} parent=0
    #allocation3 [shape = 'u8[8192]{0}', space=vmem, size = 0x2000, scoped, tag = 'output window, operand 0, single buffered']
    #allocation4 [shape = 's32[1]{0}', space=sflag, size = 0x4, scoped, tag = 'scoped memory for gemma2_mlp.1']
    %8 = vsyncpa [#allocation4], 0
    // Predicated region
    $region2: #{gemma2_mlp.1} parent=1 // pred_check
      _
    $region3: #{gemma2_mlp.1} parent=1 // pred_check_branch
      %10 = sbr.rel (0) target = $region5
    $region4: #{gemma2_mlp.1} parent=1 // pred_region
      _
    $region5: #{gemma2_mlp.1} parent=1 // pred_fallthru
      _
    // Predicated region
    $region6: #{gemma2_mlp.1} parent=1 // pred_check
      _
    $region7: #{gemma2_mlp.1} parent=1 // pred_check_branch
      %12 = sbr.rel (0) target = $region9
    $region8: #{gemma2_mlp.1} parent=1 // pred_region
      _
    $region9: #{gemma2_mlp.1} parent=1 // pred_fallthru
      _
    // Predicated region
    $region10: #{gemma2_mlp.1} parent=1 // pred_check
      _
    $region11: #{gemma2_mlp.1} parent=1 // pred_check_branch
      %14 = sbr.rel (0) target = $region13
    $region12: #{gemma2_mlp.1} parent=1 // pred_region
      _
    $region13: #{gemma2_mlp.1} parent=1 // pred_fallthru
      _
    %p15 = scmp.eq.s32.totalorder 0, 0
    // Predicated region
    $region14: #{gemma2_mlp.1} parent=1 // pred_check
      %p16 = pneg %p15
    $region15: #{gemma2_mlp.1} parent=1 // pred_check_branch
      %18 = sbr.rel (%p16) target = $region17
    $region16: #{gemma2_mlp.1} parent=1 // pred_region
      %vm19 = vcmask 261120
      %20 = vst.msk [vmem:[#allocation2] sm:$0xff] %vm19, 0.0
      %21 = vst.msk [vmem:[#allocation2 + $0x8] sm:$0xff] %vm19, 0.0
    $region17: #{gemma2_mlp.1} parent=1 // pred_fallthru
      _
    %v22 = vld [vmem:[%s0] sm:$0xff]
    %v23 = vld [vmem:[%s0 + $0x8] sm:$0xff]
    %v24 = vld [vmem:[%s1] sm:$0xff]
    %v25 = vld [vmem:[%s1 + $0x8] sm:$0xff]
    %v26 = vld [vmem:[%s1 + $0x10] sm:$0xff]
    %v27 = vld [vmem:[%s1 + $0x18] sm:$0xff]
    %v28 = vld [vmem:[%s1 + $0x20] sm:$0xff]
    %v29 = vld [vmem:[%s1 + $0x28] sm:$0xff]
    %v30 = vld [vmem:[%s1 + $0x30] sm:$0xff]
    %v31 = vld [vmem:[%s1 + $0x38] sm:$0xff]
    %vm32 = vcmask 261120
    %v34 = vsel %vm32, %v22, 0
    %v37 = vsel %vm32, %v23, 0
    %39 = vmatprep.subr.mxu0 %v25
    %40 = vmatpush1.msra.mxu0 %v24
    %41 = vmatprep.subr.mxu0 %v27
    %42 = vmatpush1.msra.mxu0 %v26
    %43 = vmatprep.subr.mxu0 %v29
    %44 = vmatpush1.msra.mxu0 %v28
    %45 = vmatprep.subr.mxu0 %v31
    %46 = vmatpush1.msra.mxu0 %v30
    %47 = vmatprep.subr.mxu0 0.0
    %48 = vmatpush1.msra.mxu0 0.0
    %49 = vmatprep.subr.mxu0 0.0
    %50 = vmatpush1.msra.mxu0 0.0
    %51 = vmatprep.subr.mxu0 0.0
    %52 = vmatpush1.msra.mxu0 0.0
    %53 = vmatprep.subr.mxu0 0.0
    %54 = vmatpush1.msra.mxu0 0.0
    %55 = vmatprep.subr.mxu0 0.0
    %56 = vmatpush1.msra.mxu0 0.0
    %57 = vmatprep.subr.mxu0 0.0
    %58 = vmatpush1.msra.mxu0 0.0
    %59 = vmatprep.subr.mxu0 0.0
    %60 = vmatpush1.msra.mxu0 0.0
    %61 = vmatprep.subr.mxu0 0.0
    %62 = vmatpush1.msra.mxu0 0.0
    %63 = vmatprep.subr.mxu0 0.0
    %64 = vmatpush1.msra.mxu0 0.0
    %65 = vmatprep.subr.mxu0 0.0
    %66 = vmatpush1.msra.mxu0 0.0
    %67 = vmatprep.subr.mxu0 0.0
    %68 = vmatpush1.msra.mxu0 0.0
    %69 = vmatprep.subr.mxu0 0.0
    %70 = vmatpush1.msra.mxu0 0.0
    %71 = vmatprep.subr.mxu0 0.0
    %72 = vmatpush1.msra.mxu0 0.0
    %73 = vmatprep.subr.mxu0 0.0
    %74 = vmatpush1.msra.mxu0 0.0
    %75 = vmatprep.subr.mxu0 0.0
    %76 = vmatpush1.msra.mxu0 0.0
    %77 = vmatprep.subr.mxu0 0.0
    %78 = vmatpush1.msra.mxu0 0.0
    %79 = vmatprep.subr.mxu0 0.0
    %80 = vmatpush1.msra.mxu0 0.0
    %81 = vmatprep.subr.mxu0 0.0
    %82 = vmatpush1.msra.mxu0 0.0
    %83 = vmatprep.subr.mxu0 0.0
    %84 = vmatpush1.msra.mxu0 0.0
    %85 = vmatprep.subr.mxu0 0.0
    %86 = vmatpush1.msra.mxu0 0.0
    %87 = vmatprep.subr.mxu0 0.0
    %88 = vmatpush1.msra.mxu0 0.0
    %89 = vmatprep.subr.mxu0 0.0
    %90 = vmatpush1.msra.mxu0 0.0
    %91 = vmatprep.subr.mxu0 0.0
    %92 = vmatpush1.msra.mxu0 0.0
    %93 = vmatprep.subr.mxu0 0.0
    %94 = vmatpush1.msra.mxu0 0.0
    %95 = vmatprep.subr.mxu0 0.0
    %96 = vmatpush1.msra.mxu0 0.0
    %97 = vmatprep.subr.mxu0 0.0
    %98 = vmatpush1.msra.mxu0 0.0
    %99 = vmatprep.subr.mxu0 0.0
    %100 = vmatpush1.msra.mxu0 0.0
    %101 = vmatprep.subr.mxu0 0.0
    %102 = vmatpush1.msra.mxu0 0.0
    %103 = vmatprep.mubr.f32.mxu0 0.0
    %104 = vmatmul.mubr.f32.gmra.mrb[0].mxu0 %v34
    %v105 = vpop.f32.mrb[0].mxu0
    %v106 = vadd.f32 0.0, %v105
    %v107 = vpop.f32.mrb[0].mxu0
    %v108 = vadd.f32 0.0, %v107
    %109 = vmatprep.mubr.f32.mxu0 0.0
    %110 = vmatmul.mubr.f32.gmra.mrb[0].mxu0 %v37
    %v111 = vpop.f32.mrb[0].mxu0
    %v112 = vadd.f32 0.0, %v111
    %v113 = vpop.f32.mrb[0].mxu0
    %v114 = vadd.f32 0.0, %v113
    %115 = vdwg.mxu0
    %v116 = vmul.f32 %v106, 0.5
    %v117 = vmul.f32 %v112, 0.5
    %v118 = vmul.f32 %v106, 0.044715
    %v119 = vmul.f32 %v112, 0.044715
    %v120 = vmul.f32 %v118, %v106
    %v121 = vmul.f32 %v119, %v112
    %v122 = vmul.f32 %v120, %v106
    %v123 = vmul.f32 %v121, %v112
    %v124 = vadd.f32 %v106, %v122
    %v125 = vadd.f32 %v112, %v123
    %v126 = vmul.f32 %v124, 0.7978846
    %v127 = vmul.f32 %v125, 0.7978846
    %v128 = vtanh.pop %v126
    %v129 = vtanh.pop %v127
    %v130 = vadd.f32 %v128, 1.0
    %v131 = vadd.f32 %v129, 1.0
    %v132 = vmul.f32 %v116, %v130
    %v133 = vmul.f32 %v117, %v131
    %v134 = vmul.f32 %v132, %v108
    %v135 = vmul.f32 %v133, %v114
    %v136 = vld [vmem:[#allocation2] sm:$0xff]
    %v137 = vld [vmem:[#allocation2 + $0x8] sm:$0xff]
    %v138 = vld [vmem:[%s2] sm:$0xff]
    %v139 = vld [vmem:[%s2 + $0x8] sm:$0xff]
    %v140 = vld [vmem:[%s2 + $0x10] sm:$0xff]
    %v141 = vld [vmem:[%s2 + $0x18] sm:$0xff]
    %v142 = vld [vmem:[%s2 + $0x20] sm:$0xff]
    %v143 = vld [vmem:[%s2 + $0x28] sm:$0xff]
    %v144 = vld [vmem:[%s2 + $0x30] sm:$0xff]
    %v145 = vld [vmem:[%s2 + $0x38] sm:$0xff]
    %v146 = vld [vmem:[%s2 + $0x40] sm:$0xff]
    %v147 = vld [vmem:[%s2 + $0x48] sm:$0xff]
    %v148 = vld [vmem:[%s2 + $0x50] sm:$0xff]
    %v149 = vld [vmem:[%s2 + $0x58] sm:$0xff]
    %v150 = vld [vmem:[%s2 + $0x60] sm:$0xff]
    %v151 = vld [vmem:[%s2 + $0x68] sm:$0xff]
    %v152 = vld [vmem:[%s2 + $0x70] sm:$0xff]
    %v153 = vld [vmem:[%s2 + $0x78] sm:$0xff]
    %154 = vmatprep.subr.mxu0 0.0
    %155 = vmatpush1.msra.mxu0 %v138
    %156 = vmatprep.subr.mxu0 0.0
    %157 = vmatpush1.msra.mxu0 %v139
    %158 = vmatprep.subr.mxu0 0.0
    %159 = vmatpush1.msra.mxu0 %v140
    %160 = vmatprep.subr.mxu0 0.0
    %161 = vmatpush1.msra.mxu0 %v141
    %162 = vmatprep.subr.mxu0 0.0
    %163 = vmatpush1.msra.mxu0 %v142
    %164 = vmatprep.subr.mxu0 0.0
    %165 = vmatpush1.msra.mxu0 %v143
    %166 = vmatprep.subr.mxu0 0.0
    %167 = vmatpush1.msra.mxu0 %v144
    %168 = vmatprep.subr.mxu0 0.0
    %169 = vmatpush1.msra.mxu0 %v145
    %170 = vmatprep.subr.mxu0 0.0
    %171 = vmatpush1.msra.mxu0 %v146
    %172 = vmatprep.subr.mxu0 0.0
    %173 = vmatpush1.msra.mxu0 %v147
    %174 = vmatprep.subr.mxu0 0.0
    %175 = vmatpush1.msra.mxu0 %v148
    %176 = vmatprep.subr.mxu0 0.0
    %177 = vmatpush1.msra.mxu0 %v149
    %178 = vmatprep.subr.mxu0 0.0
    %179 = vmatpush1.msra.mxu0 %v150
    %180 = vmatprep.subr.mxu0 0.0
    %181 = vmatpush1.msra.mxu0 %v151
    %182 = vmatprep.subr.mxu0 0.0
    %183 = vmatpush1.msra.mxu0 %v152
    %184 = vmatprep.subr.mxu0 0.0
    %185 = vmatpush1.msra.mxu0 %v153
    %186 = vmatprep.subr.mxu0 0.0
    %187 = vmatpush1.msra.mxu0 0.0
    %188 = vmatprep.subr.mxu0 0.0
    %189 = vmatpush1.msra.mxu0 0.0
    %190 = vmatprep.subr.mxu0 0.0
    %191 = vmatpush1.msra.mxu0 0.0
    %192 = vmatprep.subr.mxu0 0.0
    %193 = vmatpush1.msra.mxu0 0.0
    %194 = vmatprep.subr.mxu0 0.0
    %195 = vmatpush1.msra.mxu0 0.0
    %196 = vmatprep.subr.mxu0 0.0
    %197 = vmatpush1.msra.mxu0 0.0
    %198 = vmatprep.subr.mxu0 0.0
    %199 = vmatpush1.msra.mxu0 0.0
    %200 = vmatprep.subr.mxu0 0.0
    %201 = vmatpush1.msra.mxu0 0.0
    %202 = vmatprep.subr.mxu0 0.0
    %203 = vmatpush1.msra.mxu0 0.0
    %204 = vmatprep.subr.mxu0 0.0
    %205 = vmatpush1.msra.mxu0 0.0
    %206 = vmatprep.subr.mxu0 0.0
    %207 = vmatpush1.msra.mxu0 0.0
    %208 = vmatprep.subr.mxu0 0.0
    %209 = vmatpush1.msra.mxu0 0.0
    %210 = vmatprep.subr.mxu0 0.0
    %211 = vmatpush1.msra.mxu0 0.0
    %212 = vmatprep.subr.mxu0 0.0
    %213 = vmatpush1.msra.mxu0 0.0
    %214 = vmatprep.subr.mxu0 0.0
    %215 = vmatpush1.msra.mxu0 0.0
    %216 = vmatprep.subr.mxu0 0.0
    %217 = vmatpush1.msra.mxu0 0.0
    %218 = vmatprep.mubr.f32.mxu0 0.0
    %219 = vmatmul.mubr.f32.gmra.mrb[0].mxu0 %v134
    %v220 = vpop.f32.mrb[0].mxu0
    %v221 = vadd.f32 0.0, %v220
    %v222 = vpop.f32.mrb[0].mxu0
    %223 = vmatprep.mubr.f32.mxu0 0.0
    %224 = vmatmul.mubr.f32.gmra.mrb[0].mxu0 %v135
    %v225 = vpop.f32.mrb[0].mxu0
    %v226 = vadd.f32 0.0, %v225
    %v227 = vpop.f32.mrb[0].mxu0
    %228 = vdwg.mxu0
    %v229 = vadd.f32 %v136, %v221
    %v230 = vadd.f32 %v137, %v226
    %231 = vst.msk [vmem:[#allocation2] sm:$0xff] %vm32, %v229
    %232 = vst.msk [vmem:[#allocation2 + $0x8] sm:$0xff] %vm32, %v230
    // Predicated region
    $region18: #{gemma2_mlp.1} parent=1 // pred_check
      %p233 = pneg %p15
    $region19: #{gemma2_mlp.1} parent=1 // pred_check_branch
      %235 = sbr.rel (%p233) target = $region21
    $region20: #{gemma2_mlp.1} parent=1 // pred_region
      %v236 = vld [vmem:[#allocation2] sm:$0xff]
      %v237 = vld [vmem:[#allocation2 + $0x8] sm:$0xff]
      %238 = vst.msk [vmem:[#allocation3] sm:$0xff] %vm32, %v236
      %239 = vst.msk [vmem:[#allocation3 + $0x8] sm:$0xff] %vm32, %v237
    $region21: #{gemma2_mlp.1} parent=1 // pred_fallthru
      _
    // Predicated region
    $region22: #{gemma2_mlp.1} parent=1 // pred_check
      _
    $region23: #{gemma2_mlp.1} parent=1 // pred_check_branch
      %241 = sbr.rel (0) target = $region25
    $region24: #{gemma2_mlp.1} parent=1 // pred_region
      %s243 = ssub.s32 256, 256
      %244 = vsyncadd [#allocation4], %s243
      %s245 = sshll.u32 [#allocation3], 4
      %s246 = int_to_ptr.vmem [resolvable:$true] %s245
      %251 = dma.vmem_to_hbm [thread:$0]  %s246, 256, %s3, [#allocation4], 128, 128, 8
    $region25: #{gemma2_mlp.1} parent=1 // pred_fallthru
      _
    // Predicated region
    $region26: #{gemma2_mlp.1} parent=1 // pred_check
      _
    $region27: #{gemma2_mlp.1} parent=1 // pred_check_branch
      %253 = sbr.rel (0) target = $region29
    $region28: #{gemma2_mlp.1} parent=1 // pred_region
      %254 = dma.done [#allocation4], 256
    $region29: #{gemma2_mlp.1} parent=1 // pred_fallthru
      _
    %255 = vsyncpa [#allocation4], 1

</llo_original>
